<compile_context>
chip_gen: v6e
topology: v6e:2x2x1
jax: 0.10.0
libtpu: 0.0.40
codegen_flags: <defaults>
</compile_context>

<pallas_src>
import jax
import jax.numpy as jnp
from jax.experimental import pallas as pl
from jax.experimental.pallas import tpu as pltpu


def _make_ld_kernel(B, M, F, with_feats, compute_dtype):
    """Kernel body for an M-encoder ensemble MLP with fused layer-2 + mean."""
    MF = M * F
    inv_m1 = (1.0 / (M - 1)) if M > 1 else float("nan")  # torch unbiased-var: NaN if M==1

    def kernel(xs_ref, xa_ref, w1s_ref, w1a_ref, b1_ref, w2_ref, b2_ref, out_ref):
        # ---- layer 1, fused over encoders: xs@(Ds,M*H) + xa@(Da,M*H) ----
        xs = xs_ref[...].astype(compute_dtype)
        xa = xa_ref[...].astype(compute_dtype)
        h = jnp.dot(xs, w1s_ref[...], preferred_element_type=jnp.float32)
        h = h + jnp.dot(xa, w1a_ref[...], preferred_element_type=jnp.float32)
        h = jnp.maximum(h + b1_ref[...], 0.0)            # f32 bias + ReLU
        h = h.astype(compute_dtype)                       # bf16 (or f32) for MXU

        # ---- layer 2 + ensemble mean in ONE MXU pass: (B,M*H)@(M*H,2*M*F) ----
        #   cols [0, MF)    : block-diagonal W2  -> per-encoder features (flattened)
        #   cols [MF, 2*MF) : vstack(W2)/M tiled -> ensemble mean, tiled M times
        slab = jnp.dot(h, w2_ref[...], preferred_element_type=jnp.float32)
        slab = slab + b2_ref[...]                          # f32 biases
        feats = slab[:, :MF]                               # (B, M*F)
        mean_t = slab[:, MF:]                              # (B, M*F) tiled mean

        # ---- two-pass variance, summed over encoders AND features ----
        d = feats - mean_t
        var = jnp.sum(d * d, axis=-1, keepdims=True) * inv_m1   # (B, 1)
        var_b = jnp.broadcast_to(var, (B, F))                   # lane-dense pad

        # ---- single lane-dense output slab ----
        if with_feats:
            out_ref[...] = jnp.concatenate([feats, var_b], axis=-1).astype(out_ref.dtype)
        else:
            fmean = mean_t[:, :F]                                # (B, F)
            out_ref[...] = jnp.concatenate([fmean, var_b], axis=-1).astype(out_ref.dtype)

    return kernel


def pack_ld_params(params, state_dim, use_bf16=True):
    """One-time repack of LD parameters into the kernel's fused layouts.

    params: dict with W1 (M, Din, H), b1 (M, H), W2 (M, H, F), b2 (M, F).
    Call once per parameter update — NOT per forward.
    """
    w1, b1, w2, b2 = params["W1"], params["b1"], params["W2"], params["b2"]
    M, Din, H = w1.shape
    F = w2.shape[-1]
    cdt = jnp.bfloat16 if use_bf16 else jnp.float32

    # Layer 1: (M, Din, H) -> (Din, M*H), split by rows into states/actions parts.
    w1_all = jnp.transpose(w1, (1, 0, 2)).reshape(Din, M * H).astype(cdt)
    w1s, w1a = w1_all[:state_dim], w1_all[state_dim:]
    b1_all = b1.reshape(1, M * H).astype(jnp.float32)

    # Layer 2: block-diagonal per-encoder weights + tiled averaging head.
    w2q = w2.astype(cdt).astype(jnp.float32)               # match kernel quantization
    bd = jnp.einsum("mn,mhf->mhnf", jnp.eye(M, dtype=jnp.float32), w2q)
    bd = bd.reshape(M * H, M * F)                          # block-diagonal
    avg = jnp.tile(w2q.reshape(M * H, F) / M, (1, M))      # mean head, tiled M times
    w2_aug = jnp.concatenate([bd, avg], axis=1).astype(cdt)  # (M*H, 2*M*F)

    b2_flat = b2.reshape(1, M * F).astype(jnp.float32)
    b2_mean = jnp.tile(jnp.mean(b2, axis=0).reshape(1, F), (1, M)).astype(jnp.float32)
    b2_aug = jnp.concatenate([b2_flat, b2_mean], axis=1)   # (1, 2*M*F) f32

    return {
        "w1s": w1s, "w1a": w1a, "b1": b1_all, "w2": w2_aug, "b2": b2_aug,
        "M": M, "H": H, "F": F, "state_dim": state_dim, "compute_dtype": cdt,
    }


def ld_forward(states, actions, packed, mean=True):
    """Forward pass of LD. Returns (feature_means, var) or (flat_features, var)."""
    M, F = packed["M"], packed["F"]
    B = states.shape[0]
    with_feats = not mean
    out_w = (M * F + F) if with_feats else (2 * F)

    kernel = _make_ld_kernel(B, M, F, with_feats, packed["compute_dtype"])
    vmem = pl.BlockSpec(memory_space=pltpu.MemorySpace.VMEM)

    slab = pl.pallas_call(
        kernel,
        out_shape=jax.ShapeDtypeStruct((B, out_w), jnp.float32),
        in_specs=[vmem] * 7,
        out_specs=vmem,
    )(states, actions, packed["w1s"], packed["w1a"], packed["b1"],
      packed["w2"], packed["b2"])

    if mean:
        return slab[:, :F], slab[:, F]
    return slab[:, :M * F], slab[:, M * F]


def init_ld_params(key, nb_mlp, state_dim, action_dim, feature_dim, hidden_dim):
    din = state_dim + action_dim
    k1, k2, k3, k4 = jax.random.split(key, 4)
    W1 = 0.1 * jax.random.normal(k1, (nb_mlp, din, hidden_dim), jnp.float32)
    b1 = 0.05 * jax.random.normal(k2, (nb_mlp, hidden_dim), jnp.float32)
    W2 = 0.1 * jax.random.normal(k3, (nb_mlp, hidden_dim, feature_dim), jnp.float32)
    b2 = 0.05 * jax.random.normal(k4, (nb_mlp, feature_dim), jnp.float32)
    return {"W1": W1, "b1": b1, "W2": W2, "b2": b2}


def _ld_reference(states, actions, params, mean=True, use_bf16=True):
    """Pure-JAX reference that mimics the kernel's quantization points."""
    cdt = jnp.bfloat16 if use_bf16 else jnp.float32
    hp = jax.lax.Precision.HIGHEST
    x = jnp.concatenate([states, actions], axis=1).astype(cdt).astype(jnp.float32)
    w1 = params["W1"].astype(cdt).astype(jnp.float32)
    w2 = params["W2"].astype(cdt).astype(jnp.float32)
    h = jnp.einsum("bd,mdh->bmh", x, w1, precision=hp) + params["b1"][None]
    h = jnp.maximum(h, 0.0).astype(cdt).astype(jnp.float32)
    f = jnp.einsum("bmh,mhf->bmf", h, w2, precision=hp) + params["b2"][None]  # (B,M,F)
    means = f.mean(axis=1)
    var = f.var(axis=1, ddof=1).sum(axis=1)
    if mean:
        return means, var
    return f.reshape(f.shape[0], -1), var


if __name__ == "__main__":
    nb_mlp, state_dim, action_dim, feature_dim, hidden_dim = 4, 12, 4, 16, 32
    B = 8

    key = jax.random.PRNGKey(0)
    kp, ks, ka = jax.random.split(key, 3)
    params = init_ld_params(kp, nb_mlp, state_dim, action_dim, feature_dim, hidden_dim)
    states = jax.random.normal(ks, (B, state_dim), jnp.float32)
    actions = jax.random.normal(ka, (B, action_dim), jnp.float32)

    # --- default path: bf16 MXU inputs, f32 accumulation / statistics ---
    packed_bf16 = pack_ld_params(params, state_dim, use_bf16=True)

    means, var = ld_forward(states, actions, packed_bf16, mean=True)
    jax.block_until_ready((means, var))
    ref_means, ref_var = _ld_reference(states, actions, params, mean=True, use_bf16=True)
    assert means.shape == (B, feature_dim) and var.shape == (B,)
    assert jnp.allclose(means, ref_means, atol=2e-4, rtol=2e-3)
    assert jnp.allclose(var, ref_var, atol=2e-4, rtol=2e-3)

    flat, var2 = ld_forward(states, actions, packed_bf16, mean=False)
    jax.block_until_ready((flat, var2))
    ref_flat, ref_var2 = _ld_reference(states, actions, params, mean=False, use_bf16=True)
    assert flat.shape == (B, nb_mlp * feature_dim)
    assert jnp.allclose(flat, ref_flat, atol=2e-4, rtol=2e-3)
    assert jnp.allclose(var2, ref_var2, atol=2e-4, rtol=2e-3)

    # --- full-f32 path (original-module numerics) ---
    packed_f32 = pack_ld_params(params, state_dim, use_bf16=False)
    means32, var32 = ld_forward(states, actions, packed_f32, mean=True)
    jax.block_until_ready((means32, var32))
    ref_means32, ref_var32 = _ld_reference(states, actions, params, mean=True, use_bf16=False)
    assert jnp.allclose(means32, ref_means32, atol=1e-4, rtol=1e-3)
    assert jnp.allclose(var32, ref_var32, atol=1e-4, rtol=1e-3)

    print("KERNEL_OK")
</pallas_src>

<mosaic_0001>
module attributes {stable_mosaic.version = 11 : i64} {
  func.func @kernel(%arg0: memref<8x12xf32, #tpu.memory_space<vmem>>, %arg1: memref<8x4xf32, #tpu.memory_space<vmem>>, %arg2: memref<12x128xbf16, #tpu.memory_space<vmem>>, %arg3: memref<4x128xbf16, #tpu.memory_space<vmem>>, %arg4: memref<1x128xf32, #tpu.memory_space<vmem>>, %arg5: memref<128x128xbf16, #tpu.memory_space<vmem>>, %arg6: memref<1x128xf32, #tpu.memory_space<vmem>>, %arg7: memref<8x32xf32, #tpu.memory_space<vmem>>) attributes {dimension_semantics = [], scalar_prefetch = 0 : i64, scratch_operands = 0 : i64, tpu.core_type = #tpu.core_type<tc>} {
    %c0 = arith.constant 0 : index
    %c0_0 = arith.constant 0 : index
    %0 = vector.load %arg0[%c0, %c0_0] : memref<8x12xf32, #tpu.memory_space<vmem>>, vector<8x12xf32>
    %1 = arith.truncf %0 : vector<8x12xf32> to vector<8x12xbf16>
    %c0_1 = arith.constant 0 : index
    %c0_2 = arith.constant 0 : index
    %2 = vector.load %arg1[%c0_1, %c0_2] : memref<8x4xf32, #tpu.memory_space<vmem>>, vector<8x4xf32>
    %3 = arith.truncf %2 : vector<8x4xf32> to vector<8x4xbf16>
    %c0_3 = arith.constant 0 : index
    %c0_4 = arith.constant 0 : index
    %4 = vector.load %arg2[%c0_3, %c0_4] : memref<12x128xbf16, #tpu.memory_space<vmem>>, vector<12x128xbf16>
    %cst = arith.constant dense<0.000000e+00> : vector<8x128xf32>
    %5 = tpu.matmul %1, %4, %cst {dimension_numbers = #tpu.dot_dimension_numbers<[1], [0], [0], [1], [0, 0, 1, 1], [], []>} : vector<8x12xbf16>, vector<12x128xbf16>, vector<8x128xf32> -> vector<8x128xf32>
    %c0_5 = arith.constant 0 : index
    %c0_6 = arith.constant 0 : index
    %6 = vector.load %arg3[%c0_5, %c0_6] : memref<4x128xbf16, #tpu.memory_space<vmem>>, vector<4x128xbf16>
    %cst_7 = arith.constant dense<0.000000e+00> : vector<8x128xf32>
    %7 = tpu.matmul %3, %6, %cst_7 {dimension_numbers = #tpu.dot_dimension_numbers<[1], [0], [0], [1], [0, 0, 1, 1], [], []>} : vector<8x4xbf16>, vector<4x128xbf16>, vector<8x128xf32> -> vector<8x128xf32>
    %8 = arith.addf %5, %7 : vector<8x128xf32>
    %c0_8 = arith.constant 0 : index
    %c0_9 = arith.constant 0 : index
    %9 = vector.load %arg4[%c0_8, %c0_9] : memref<1x128xf32, #tpu.memory_space<vmem>>, vector<1x128xf32>
    %10 = vector.broadcast %9 : vector<1x128xf32> to vector<8x128xf32>
    %11 = arith.addf %8, %10 : vector<8x128xf32>
    %cst_10 = arith.constant 0.000000e+00 : f32
    %12 = vector.broadcast %cst_10 : f32 to vector<8x128xf32>
    %13 = arith.maximumf %11, %12 : vector<8x128xf32>
    %14 = arith.truncf %13 : vector<8x128xf32> to vector<8x128xbf16>
    %c0_11 = arith.constant 0 : index
    %c0_12 = arith.constant 0 : index
    %15 = vector.load %arg5[%c0_11, %c0_12] : memref<128x128xbf16, #tpu.memory_space<vmem>>, vector<128x128xbf16>
    %cst_13 = arith.constant dense<0.000000e+00> : vector<8x128xf32>
    %16 = tpu.matmul %14, %15, %cst_13 {dimension_numbers = #tpu.dot_dimension_numbers<[1], [0], [0], [1], [0, 0, 1, 1], [], []>} : vector<8x128xbf16>, vector<128x128xbf16>, vector<8x128xf32> -> vector<8x128xf32>
    %c0_14 = arith.constant 0 : index
    %c0_15 = arith.constant 0 : index
    %17 = vector.load %arg6[%c0_14, %c0_15] : memref<1x128xf32, #tpu.memory_space<vmem>>, vector<1x128xf32>
    %18 = vector.broadcast %17 : vector<1x128xf32> to vector<8x128xf32>
    %19 = arith.addf %16, %18 : vector<8x128xf32>
    %20 = vector.extract_strided_slice %19 {offsets = [0, 0], sizes = [8, 64], strides = [1, 1]} : vector<8x128xf32> to vector<8x64xf32>
    %21 = vector.extract_strided_slice %19 {offsets = [0, 64], sizes = [8, 64], strides = [1, 1]} : vector<8x128xf32> to vector<8x64xf32>
    %22 = arith.subf %20, %21 : vector<8x64xf32>
    %23 = arith.mulf %22, %22 : vector<8x64xf32>
    %cst_16 = arith.constant dense<0.000000e+00> : vector<8xf32>
    %24 = vector.multi_reduction <add>, %23, %cst_16 [1] : vector<8x64xf32> to vector<8xf32>
    %25 = vector.shape_cast %24 : vector<8xf32> to vector<8x1xf32>
    %cst_17 = arith.constant 0.333333343 : f32
    %26 = vector.broadcast %cst_17 : f32 to vector<8x1xf32>
    %27 = arith.mulf %25, %26 : vector<8x1xf32>
    %28 = vector.shape_cast %27 : vector<8x1xf32> to vector<8x1xf32>
    %29 = vector.broadcast %28 : vector<8x1xf32> to vector<8x16xf32>
    %30 = vector.extract_strided_slice %21 {offsets = [0, 0], sizes = [8, 16], strides = [1, 1]} : vector<8x64xf32> to vector<8x16xf32>
    %31 = tpu.concatenate %30, %29 in 1 : vector<8x16xf32>, vector<8x16xf32> -> vector<8x32xf32>
    %c0_18 = arith.constant 0 : index
    %c0_19 = arith.constant 0 : index
    %32 = vector.load %arg7[%c0_18, %c0_19] : memref<8x32xf32, #tpu.memory_space<vmem>>, vector<8x32xf32>
    tpu.vector_store %arg7[%c0_18, %c0_19], %31 {strides = array<i32>} : memref<8x32xf32, #tpu.memory_space<vmem>>, vector<8x32xf32>,
    return
  }
}

</mosaic_0001>

<llo_original>
// kernel: tpu_custom_call.1
$region0: #{tpu_custom_call.1}
  #allocation0 [shape = 'u32[]', space=smem, size = 0x4, offset = 0x4, fixed_abs, tag = 'smem constant byte address 0x4 - core index']
  #allocation1 [shape = 'u32[144,128]{1,0:T(1,128)}', space=vmem, size = 0x12000, scoped, tag = 'internal scratch']
  %s0 = inlined_call_operand.vmem [shape: f32[8,12], index: 0, kind: input, shape index: {}]
  %s1 = inlined_call_operand.vmem [shape: f32[8,4], index: 1, kind: input, shape index: {}]
  %s2 = inlined_call_operand.hbm [shape: bf16[12,128], index: 2, kind: input, shape index: {}]
  %s3 = inlined_call_operand.vmem [shape: bf16[4,128], index: 3, kind: input, shape index: {}]
  %s4 = inlined_call_operand.vmem [shape: f32[1,128], index: 4, kind: input, shape index: {}]
  %s5 = inlined_call_operand.hbm [shape: bf16[128,128], index: 5, kind: input, shape index: {}]
  %s6 = inlined_call_operand.vmem [shape: f32[1,128], index: 6, kind: input, shape index: {}]
  %s7 = inlined_call_operand.hbm [shape: f32[8,32], index: 7, kind: output, shape index: {}]
  %s8 = sld [smem:[#allocation0]]
  $region46: #{tpu_custom_call.1} parent=0
    _
  %s10 = ssub.s32 1, %s8
  %s11 = scalar_select 0, %s10, %s8
  $region1: #{tpu_custom_call.1} parent=0
    #allocation2 [shape = 'u8[4096]{0}', space=vmem, size = 0x1000, scoped, tag = 'input window, operand 2, single buffered']
    #allocation3 [shape = 's32[1]{0}', space=sflag, size = 0x4, scoped, tag = 'scoped memory for tpu_custom_call.1']
    #allocation4 [shape = 's32[1]{0}', space=sflag, size = 0x4, scoped, tag = 'scoped memory for tpu_custom_call.1']
    #allocation5 [shape = 'u8[32768]{0}', space=vmem, size = 0x8000, scoped, tag = 'input window, operand 5, single buffered']
    #allocation6 [shape = 's32[1]{0}', space=sflag, size = 0x4, scoped, tag = 'scoped memory for tpu_custom_call.1']
    #allocation7 [shape = 'u8[4096]{0}', space=vmem, size = 0x1000, scoped, tag = 'output window, operand 0, single buffered']
    %12 = vsyncpa [#allocation3], 0
    %13 = vsyncpa [#allocation6], 0
    %14 = vsyncpa [#allocation4], 0
    // Predicated region
    $region2: #{tpu_custom_call.1} parent=1 // pred_check
      _
    $region3: #{tpu_custom_call.1} parent=1 // pred_check_branch
      %16 = sbr.rel (0) target = $region5
    $region4: #{tpu_custom_call.1} parent=1 // pred_region
      _
    $region5: #{tpu_custom_call.1} parent=1 // pred_fallthru
      _
    // Predicated region
    $region6: #{tpu_custom_call.1} parent=1 // pred_check
      _
    $region7: #{tpu_custom_call.1} parent=1 // pred_check_branch
      %18 = sbr.rel (0) target = $region9
    $region8: #{tpu_custom_call.1} parent=1 // pred_region
      _
    $region9: #{tpu_custom_call.1} parent=1 // pred_fallthru
      _
    // Predicated region
    $region10: #{tpu_custom_call.1} parent=1 // pred_check
      _
    $region11: #{tpu_custom_call.1} parent=1 // pred_check_branch
      %20 = sbr.rel (0) target = $region13
    $region12: #{tpu_custom_call.1} parent=1 // pred_region
      %s22 = ssub.s32 128, 128
      %23 = vsyncadd [#allocation3], %s22
      %s24 = sshll.u32 [#allocation2], 4
      %s25 = int_to_ptr.vmem [resolvable:$true] %s24
      %30 = dma.hbm_to_vmem [thread:$0]  %s2, 128, %s25, [#allocation3], 64, 64, 4
    $region13: #{tpu_custom_call.1} parent=1 // pred_fallthru
      _
    // Predicated region
    $region14: #{tpu_custom_call.1} parent=1 // pred_check
      _
    $region15: #{tpu_custom_call.1} parent=1 // pred_check_branch
      %32 = sbr.rel (0) target = $region17
    $region16: #{tpu_custom_call.1} parent=1 // pred_region
      _
    $region17: #{tpu_custom_call.1} parent=1 // pred_fallthru
      _
    // Predicated region
    $region18: #{tpu_custom_call.1} parent=1 // pred_check
      _
    $region19: #{tpu_custom_call.1} parent=1 // pred_check_branch
      %34 = sbr.rel (0) target = $region21
    $region20: #{tpu_custom_call.1} parent=1 // pred_region
      _
    $region21: #{tpu_custom_call.1} parent=1 // pred_fallthru
      _
    // Predicated region
    $region22: #{tpu_custom_call.1} parent=1 // pred_check
      _
    $region23: #{tpu_custom_call.1} parent=1 // pred_check_branch
      %36 = sbr.rel (0) target = $region25
    $region24: #{tpu_custom_call.1} parent=1 // pred_region
      %s38 = ssub.s32 1024, 1024
      %39 = vsyncadd [#allocation6], %s38
      %s40 = sshll.u32 [#allocation5], 4
      %s41 = int_to_ptr.vmem [resolvable:$true] %s40
      %46 = dma.hbm_to_vmem [thread:$0]  %s5, 1024, %s41, [#allocation6], 64, 64, 4
    $region25: #{tpu_custom_call.1} parent=1 // pred_fallthru
      _
    // Predicated region
    $region26: #{tpu_custom_call.1} parent=1 // pred_check
      _
    $region27: #{tpu_custom_call.1} parent=1 // pred_check_branch
      %48 = sbr.rel (0) target = $region29
    $region28: #{tpu_custom_call.1} parent=1 // pred_region
      _
    $region29: #{tpu_custom_call.1} parent=1 // pred_fallthru
      _
    // Predicated region
    $region30: #{tpu_custom_call.1} parent=1 // pred_check
      _
    $region31: #{tpu_custom_call.1} parent=1 // pred_check_branch
      %50 = sbr.rel (0) target = $region33
    $region32: #{tpu_custom_call.1} parent=1 // pred_region
      %51 = dma.done [#allocation3], 128
    $region33: #{tpu_custom_call.1} parent=1 // pred_fallthru
      _
    // Predicated region
    $region34: #{tpu_custom_call.1} parent=1 // pred_check
      _
    $region35: #{tpu_custom_call.1} parent=1 // pred_check_branch
      %53 = sbr.rel (0) target = $region37
    $region36: #{tpu_custom_call.1} parent=1 // pred_region
      %54 = dma.done [#allocation6], 1024
    $region37: #{tpu_custom_call.1} parent=1 // pred_fallthru
      _
    %v56 = vld [vmem:[%s0] sm:$0xff]
    %v57 = vpack.c.bf16 %v56, %v56
    %v58 = vld [vmem:[%s1] sm:$0xff]
    %v59 = vpack.c.bf16 %v58, %v58
    %v60 = vld [vmem:[#allocation2] sm:$0xf]
    %v61 = vld [vmem:[#allocation2 + $0x4] sm:$0x3]
    %v62 = vld [vmem:[%s3] sm:$0x3]
    %vm63 = vcmask 31744
    %v65 = vsel %vm63, %v59, 0
    %vm67 = vcmask 1041408
    %v69 = vsel %vm67, %v62, 0
    %71 = vmatprep.subr.bf16.mxu0 0
    %72 = vmatpush1.bf16.msra.mxu0 0
    %73 = vmatprep.subr.bf16.mxu0 0
    %74 = vmatpush1.bf16.msra.mxu0 0
    %75 = vmatprep.subr.bf16.mxu0 0
    %76 = vmatpush1.bf16.msra.mxu0 0
    %77 = vmatprep.subr.bf16.mxu0 0
    %78 = vmatpush1.bf16.msra.mxu0 0
    %79 = vmatprep.subr.bf16.mxu0 0
    %80 = vmatpush1.bf16.msra.mxu0 0
    %81 = vmatprep.subr.bf16.mxu0 0
    %82 = vmatpush1.bf16.msra.mxu0 0
    %83 = vmatprep.subr.bf16.mxu0 0
    %84 = vmatpush1.bf16.msra.mxu0 0
    %85 = vmatprep.subr.bf16.mxu0 0
    %86 = vmatpush1.bf16.msra.mxu0 %v69
    %87 = vmatprep.subr.bf16.mxu0 0
    %88 = vmatpush2.bf16.msra.mxu0 0
    %89 = vmatprep.subr.bf16.mxu0 0
    %90 = vmatpush2.bf16.msra.mxu0 0
    %91 = vmatprep.subr.bf16.mxu0 0
    %92 = vmatpush2.bf16.msra.mxu0 0
    %93 = vmatprep.subr.bf16.mxu0 0
    %94 = vmatpush2.bf16.msra.mxu0 0
    %95 = vmatprep.subr.bf16.mxu0 0
    %96 = vmatpush2.bf16.msra.mxu0 0
    %97 = vmatprep.subr.bf16.mxu0 0
    %98 = vmatpush2.bf16.msra.mxu0 0
    %99 = vmatprep.subr.bf16.mxu0 0
    %100 = vmatpush2.bf16.msra.mxu0 0
    %101 = vmatprep.subr.bf16.mxu0 0
    %102 = vmatpush2.bf16.msra.mxu0 0
    %103 = vmatprep.mubr.bf16.mxu0 0
    %104 = vmatmul.mubr.bf16.gmra.mxu0 %v65
    %v105 = vpop.f32.mrf.mxu0
    %v106 = vadd.f32 0.0, %v105
    %v107 = vpop.f32.mrf.mxu0
    %v108 = vpop.f32.mrf.mxu0
    %v109 = vpop.f32.mrf.mxu0
    %110 = vdwg.mxu0
    %v113 = vunpack.c.l.b16 %v60
    %v114 = vunpack.c.l.b16 %v61
    %v115 = vpack.c.b16 %v114, %v113
    %vm116 = vcmask 97280
    %v118 = vsel %vm116, %v57, 0
    %vm120 = vcmask 1045504
    %v122 = vsel %vm120, %v115, 0
    %124 = vmatprep.subr.bf16.mxu0 0
    %125 = vmatpush1.bf16.msra.mxu0 0
    %126 = vmatprep.subr.bf16.mxu0 0
    %127 = vmatpush1.bf16.msra.mxu0 0
    %128 = vmatprep.subr.bf16.mxu0 0
    %129 = vmatpush1.bf16.msra.mxu0 0
    %130 = vmatprep.subr.bf16.mxu0 0
    %131 = vmatpush1.bf16.msra.mxu0 0
    %132 = vmatprep.subr.bf16.mxu0 0
    %133 = vmatpush1.bf16.msra.mxu0 0
    %134 = vmatprep.subr.bf16.mxu0 0
    %135 = vmatpush1.bf16.msra.mxu0 0
    %136 = vmatprep.subr.bf16.mxu0 0
    %137 = vmatpush1.bf16.msra.mxu0 0
    %138 = vmatprep.subr.bf16.mxu0 0
    %139 = vmatpush1.bf16.msra.mxu0 %v122
    %140 = vmatprep.subr.bf16.mxu0 0
    %141 = vmatpush2.bf16.msra.mxu0 0
    %142 = vmatprep.subr.bf16.mxu0 0
    %143 = vmatpush2.bf16.msra.mxu0 0
    %144 = vmatprep.subr.bf16.mxu0 0
    %145 = vmatpush2.bf16.msra.mxu0 0
    %146 = vmatprep.subr.bf16.mxu0 0
    %147 = vmatpush2.bf16.msra.mxu0 0
    %148 = vmatprep.subr.bf16.mxu0 0
    %149 = vmatpush2.bf16.msra.mxu0 0
    %150 = vmatprep.subr.bf16.mxu0 0
    %151 = vmatpush2.bf16.msra.mxu0 0
    %152 = vmatprep.subr.bf16.mxu0 0
    %153 = vmatpush2.bf16.msra.mxu0 0
    %154 = vmatprep.subr.bf16.mxu0 0
    %155 = vmatpush2.bf16.msra.mxu0 0
    %156 = vmatprep.mubr.bf16.mxu0 0
    %157 = vmatmul.mubr.bf16.gmra.mxu0 %v118
    %v158 = vpop.f32.mrf.mxu0
    %v159 = vadd.f32 %v106, %v158
    %v160 = vpop.f32.mrf.mxu0
    %v161 = vpop.f32.mrf.mxu0
    %v162 = vpop.f32.mrf.mxu0
    %163 = vdwg.mxu0
    %v164 = vld [vmem:[%s4] sm:$0x1]
    %v166 = vlaneseq
    %v167 = vshrl.u32 %v166, 7
    %v168 = vsub.s32 0, %v167
    %v169 = vrot.slane %v164, %v168
    %v171 = vadd.f32 %v159, %v169
    %v172 = vmax.f32 %v171, 0.0
    %v173 = vpack.c.bf16 %v172, %v172
    %v174 = vld [vmem:[#allocation5] sm:$0xf]
    %v175 = vld [vmem:[#allocation5 + $0x4] sm:$0xf]
    %v176 = vld [vmem:[#allocation5 + $0x8] sm:$0xf]
    %v177 = vld [vmem:[#allocation5 + $0xc] sm:$0xf]
    %v178 = vld [vmem:[#allocation5 + $0x10] sm:$0xf]
    %v179 = vld [vmem:[#allocation5 + $0x14] sm:$0xf]
    %v180 = vld [vmem:[#allocation5 + $0x18] sm:$0xf]
    %v181 = vld [vmem:[#allocation5 + $0x1c] sm:$0xf]
    %v182 = vld [vmem:[#allocation5 + $0x20] sm:$0xf]
    %v183 = vld [vmem:[#allocation5 + $0x24] sm:$0xf]
    %v184 = vld [vmem:[#allocation5 + $0x28] sm:$0xf]
    %v185 = vld [vmem:[#allocation5 + $0x2c] sm:$0xf]
    %v186 = vld [vmem:[#allocation5 + $0x30] sm:$0xf]
    %v187 = vld [vmem:[#allocation5 + $0x34] sm:$0xf]
    %v188 = vld [vmem:[#allocation5 + $0x38] sm:$0xf]
    %v189 = vld [vmem:[#allocation5 + $0x3c] sm:$0xf]
    %v190 = vld [vmem:[%s6] sm:$0x1]
    %v192 = vlaneseq
    %v193 = vshrl.u32 %v192, 7
    %v194 = vsub.s32 0, %v193
    %v195 = vrot.slane %v190, %v194
    %v213 = vunpack.c.l.b16 %v174
    %v214 = vunpack.c.l.b16 %v175
    %v215 = vunpack.c.l.b16 %v176
    %v216 = vunpack.c.l.b16 %v177
    %v217 = vunpack.c.l.b16 %v178
    %v218 = vunpack.c.l.b16 %v179
    %v219 = vunpack.c.l.b16 %v180
    %v220 = vunpack.c.l.b16 %v181
    %v221 = vunpack.c.l.b16 %v182
    %v222 = vunpack.c.l.b16 %v183
    %v223 = vunpack.c.l.b16 %v184
    %v224 = vunpack.c.l.b16 %v185
    %v225 = vunpack.c.l.b16 %v186
    %v226 = vunpack.c.l.b16 %v187
    %v227 = vunpack.c.l.b16 %v188
    %v228 = vunpack.c.l.b16 %v189
    %v229 = vpack.c.b16 %v214, %v213
    %v230 = vpack.c.b16 %v216, %v215
    %v231 = vpack.c.b16 %v218, %v217
    %v232 = vpack.c.b16 %v220, %v219
    %v233 = vpack.c.b16 %v222, %v221
    %v234 = vpack.c.b16 %v224, %v223
    %v235 = vpack.c.b16 %v226, %v225
    %v236 = vpack.c.b16 %v228, %v227
    %245 = vmatprep.subr.bf16.mxu0 0
    %246 = vmatpush1.bf16.msra.mxu0 %v236
    %247 = vmatprep.subr.bf16.mxu0 0
    %248 = vmatpush1.bf16.msra.mxu0 %v235
    %249 = vmatprep.subr.bf16.mxu0 0
    %250 = vmatpush1.bf16.msra.mxu0 %v234
    %251 = vmatprep.subr.bf16.mxu0 0
    %252 = vmatpush1.bf16.msra.mxu0 %v233
    %253 = vmatprep.subr.bf16.mxu0 0
    %254 = vmatpush1.bf16.msra.mxu0 %v232
    %255 = vmatprep.subr.bf16.mxu0 0
    %256 = vmatpush1.bf16.msra.mxu0 %v231
    %257 = vmatprep.subr.bf16.mxu0 0
    %258 = vmatpush1.bf16.msra.mxu0 %v230
    %259 = vmatprep.subr.bf16.mxu0 0
    %260 = vmatpush1.bf16.msra.mxu0 %v229
    %261 = vmatprep.subr.bf16.mxu0 0
    %262 = vmatpush2.bf16.msra.mxu0 0
    %263 = vmatprep.subr.bf16.mxu0 0
    %264 = vmatpush2.bf16.msra.mxu0 0
    %265 = vmatprep.subr.bf16.mxu0 0
    %266 = vmatpush2.bf16.msra.mxu0 0
    %267 = vmatprep.subr.bf16.mxu0 0
    %268 = vmatpush2.bf16.msra.mxu0 0
    %269 = vmatprep.subr.bf16.mxu0 0
    %270 = vmatpush2.bf16.msra.mxu0 0
    %271 = vmatprep.subr.bf16.mxu0 0
    %272 = vmatpush2.bf16.msra.mxu0 0
    %273 = vmatprep.subr.bf16.mxu0 0
    %274 = vmatpush2.bf16.msra.mxu0 0
    %275 = vmatprep.subr.bf16.mxu0 0
    %276 = vmatpush2.bf16.msra.mxu0 0
    %277 = vmatprep.mubr.bf16.mxu0 0
    %278 = vmatmul.mubr.bf16.gmra.mxu0 %v173
    %v279 = vpop.f32.mrf.mxu0
    %v280 = vadd.f32 %v195, %v279
    %v281 = vpop.f32.mrf.mxu0
    %v282 = vpop.f32.mrf.mxu0
    %v283 = vpop.f32.mrf.mxu0
    %284 = vdwg.mxu0
    %286 = vrot.lane.b32.xlu0 %v280, 64
    %v287 = vpop.permute.xlu0 %286
    %v289 = vsub.f32 %v280, %v287
    %v290 = vmul.f32 %v289, %v289
    %vm291 = vcmask 523264
    %v292 = vsel %vm291, %v290, 0.0
    %293 = vadd.xlane.f32.xlu0 %v292
    %v294 = vpop.xlane.xlu0 %293
    %v295 = vmul.f32 %v294, 0.33333334
    %vm296 = vcmask 130048
    %v297 = vsel %vm296, %v287, %v295
    %vm298 = vcmask 261120
    %299 = vst.msk [vmem:[#allocation7] sm:$0xff] %vm298, %v297
    // Predicated region
    $region38: #{tpu_custom_call.1} parent=1 // pred_check
      _
    $region39: #{tpu_custom_call.1} parent=1 // pred_check_branch
      %301 = sbr.rel (0) target = $region41
    $region40: #{tpu_custom_call.1} parent=1 // pred_region
      %s303 = ssub.s32 128, 128
      %304 = vsyncadd [#allocation4], %s303
      %s306 = sshll.u32 [#allocation7], 4
      %s307 = int_to_ptr.vmem [resolvable:$true] %s306
      %309 = dma.vmem_to_hbm [thread:$0]  %s307, 128, %s7, [#allocation4]
    $region41: #{tpu_custom_call.1} parent=1 // pred_fallthru
      _
    // Predicated region
    $region42: #{tpu_custom_call.1} parent=1 // pred_check
      _
    $region43: #{tpu_custom_call.1} parent=1 // pred_check_branch
      %311 = sbr.rel (0) target = $region45
    $region44: #{tpu_custom_call.1} parent=1 // pred_region
      %312 = dma.done [#allocation4], 128
    $region45: #{tpu_custom_call.1} parent=1 // pred_fallthru
      _
    %313 = vsyncpa [#allocation3], 1
    %314 = vsyncpa [#allocation6], 1
    %315 = vsyncpa [#allocation4], 1

</llo_original>
